<compile_context>
chip_gen: v7x
topology: tpu7x:2x2x1
jax: 0.10.0
libtpu: 0.0.40
codegen_flags: <defaults>
</compile_context>

<pallas_src>
import functools

import jax
import jax.numpy as jnp
from jax.experimental import pallas as pl
from jax.experimental.pallas import tpu as pltpu

_NEG_BIG = -1e30          # additive mask value for non-edges (f32 safe)
_EMPTY_ROW_THRESH = -1e29  # row_max below this => node has no outgoing edge


# --------------------------------------------------------------------------
# Fused Pallas kernel
# --------------------------------------------------------------------------
def _gat_layer_body(x, w_bf16, a_rows, bias, alpha):
    """One GAT layer on in-VMEM values.

    h = xW ; e_ij = leaky_relu(a_src.h_i + a_dst.h_j) on edges ;
    A = row-softmax over edges ; return elu(A h).
    """
    # bf16 operands, f32 accumulation (MXU fast path on v6e/v7x).
    h = jnp.dot(x.astype(jnp.bfloat16), w_bf16,
                preferred_element_type=jnp.float32)               # (N, Fout) f32

    # Attention scores via VPU lane-reduction (no lane-width-1 matmuls).
    e_src = jnp.sum(h * a_rows[0:1, :], axis=-1, keepdims=True)   # (N, 1)
    e_dst = jnp.sum(h * a_rows[1:2, :], axis=-1, keepdims=True)   # (N, 1)

    s = e_src + jnp.transpose(e_dst)                              # (N, N)
    s = jnp.where(s >= 0.0, s, alpha * s)                         # leaky_relu
    s = s + bias                                                  # 0 / -1e30 mask

    # Masked row softmax; off-edge entries underflow to exactly 0 in f32.
    row_max = jnp.max(s, axis=1, keepdims=True)
    p = jnp.exp(s - row_max)
    denom = jnp.sum(p, axis=1, keepdims=True)
    # Rows with no edges -> all-zero attention (matches sparse softmax.to_dense()).
    inv = jnp.where(row_max > jnp.float32(_EMPTY_ROW_THRESH), 1.0 / denom, 0.0)
    attn = p * inv                                                # (N, N) f32

    out = jnp.dot(attn.astype(jnp.bfloat16), h.astype(jnp.bfloat16),
                  preferred_element_type=jnp.float32)             # (N, Fout)
    # ELU(alpha=1); clamp before exp so the EUP never sees large positives.
    return jnp.where(out > 0.0, out, jnp.exp(jnp.minimum(out, 0.0)) - 1.0)


def _gat_fused_kernel(x_ref, w0_ref, a0_ref, w1_ref, a1_ref, wl_ref, bl_ref,
                      bias_ref, o_ref, *, alpha):
    bias = bias_ref[...]                                          # read once, reuse
    h0 = _gat_layer_body(x_ref[...], w0_ref[...], a0_ref[...], bias, alpha)
    h1 = _gat_layer_body(h0, w1_ref[...], a1_ref[...], bias, alpha)

    # dropout(training=False) == identity
    # Final Linear + log_softmax (tiny; kept fully in f32).
    z = jnp.dot(h1, wl_ref[...], preferred_element_type=jnp.float32)
    z = z + bl_ref[...]                                           # (N, C)
    m = jnp.max(z, axis=1, keepdims=True)
    lse = jnp.log(jnp.sum(jnp.exp(z - m), axis=1, keepdims=True)) + m
    o_ref[...] = z - lse


# --------------------------------------------------------------------------
# Wrapper (whole arrays as single VMEM blocks — shapes here are tiny)
# --------------------------------------------------------------------------
_VMEM = pl.BlockSpec(memory_space=pltpu.MemorySpace.VMEM)


def gat_forward(x, edge, params, alpha):
    n = x.shape[0]
    out0 = params["W0"].shape[1]          # 2*hid_dim
    out1 = params["W1"].shape[1]          # hid_dim
    n_cls = params["Wl_t"].shape[1]

    # Densify the edge list into an additive attention bias (glue, plain JAX):
    # 0 where an edge exists, -1e30 elsewhere.  Read once by the fused kernel.
    bias = (jnp.full((n, n), _NEG_BIG, jnp.float32)
            .at[edge[0, :], edge[1, :]].set(0.0))

    # a = [a_src; a_dst] (2*Fout, 1)  ->  (2, Fout) rows for lane-broadcast.
    a0_rows = params["a0"].reshape(2, out0)
    a1_rows = params["a1"].reshape(2, out1)

    kernel = functools.partial(_gat_fused_kernel, alpha=alpha)
    return pl.pallas_call(
        kernel,
        out_shape=jax.ShapeDtypeStruct((n, n_cls), jnp.float32),
        in_specs=[_VMEM] * 8,
        out_specs=_VMEM,
    )(x,
      params["W0"].astype(jnp.bfloat16), a0_rows,
      params["W1"].astype(jnp.bfloat16), a1_rows,
      params["Wl_t"], params["bl"].reshape(1, n_cls),
      bias)


# --------------------------------------------------------------------------
# Deterministic parameter init (xavier_normal for W / a, like the reference)
# --------------------------------------------------------------------------
def xavier_normal(key, shape):
    fan_in, fan_out = shape[0], shape[1]
    std = (2.0 / (fan_in + fan_out)) ** 0.5
    return std * jax.random.normal(key, shape, dtype=jnp.float32)


if __name__ == "__main__":
    # small shapes consistent with the module
    N, IN_DIM, HID_DIM, OUT_DIM = 16, 32, 16, 8
    ALPHA = 0.2    # leaky_relu negative slope
    DROPOUT = 0.5  # unused at inference

    key = jax.random.PRNGKey(0)
    kx, k0, k1, k2, k3, k4, k5 = jax.random.split(key, 7)

    x = jax.random.normal(kx, (N, IN_DIM), dtype=jnp.float32)

    # deterministic edge list: self loops + two ring offsets (no duplicates)
    src = jnp.concatenate([jnp.arange(N)] * 3)
    dst = jnp.concatenate([jnp.arange(N), (jnp.arange(N) + 1) % N,
                           (jnp.arange(N) + 3) % N])
    edge = jnp.stack([src, dst]).astype(jnp.int32)      # (2, E)

    params = {
        # layer0: in_dim -> 2*hid_dim
        "W0": xavier_normal(k0, (IN_DIM, 2 * HID_DIM)),
        "a0": xavier_normal(k1, (4 * HID_DIM, 1)),
        # layer1: 2*hid_dim -> hid_dim
        "W1": xavier_normal(k2, (2 * HID_DIM, HID_DIM)),
        "a1": xavier_normal(k3, (2 * HID_DIM, 1)),
        # final Linear(hid_dim, out_dim); stored pre-transposed for h @ W^T
        "Wl_t": (jax.random.uniform(k4, (OUT_DIM, HID_DIM), jnp.float32,
                                    -1.0, 1.0) / (HID_DIM ** 0.5)).T,
        "bl": jax.random.uniform(k5, (OUT_DIM,), jnp.float32,
                                 -1.0, 1.0) / (HID_DIM ** 0.5),
    }

    out = gat_forward(x, edge, params, ALPHA)
    jax.block_until_ready(out)
    assert out.shape == (N, OUT_DIM)
    assert bool(jnp.all(jnp.isfinite(out)))
    # log_softmax rows must sum to ~1 in prob space
    assert bool(jnp.all(jnp.abs(jnp.sum(jnp.exp(out), axis=1) - 1.0) < 1e-3))
    print("KERNEL_OK")
</pallas_src>

<mosaic_0001>
module attributes {stable_mosaic.version = 11 : i64} {
  func.func @_gat_fused_kernel(%arg0: memref<16x32xf32, #tpu.memory_space<vmem>>, %arg1: memref<32x32xbf16, #tpu.memory_space<vmem>>, %arg2: memref<2x32xf32, #tpu.memory_space<vmem>>, %arg3: memref<32x16xbf16, #tpu.memory_space<vmem>>, %arg4: memref<2x16xf32, #tpu.memory_space<vmem>>, %arg5: memref<16x8xf32, #tpu.memory_space<vmem>>, %arg6: memref<1x8xf32, #tpu.memory_space<vmem>>, %arg7: memref<16x16xf32, #tpu.memory_space<vmem>>, %arg8: memref<16x8xf32, #tpu.memory_space<vmem>>) attributes {dimension_semantics = [], scalar_prefetch = 0 : i64, scratch_operands = 0 : i64, tpu.core_type = #tpu.core_type<tc>} {
    %c0 = arith.constant 0 : index
    %c0_0 = arith.constant 0 : index
    %0 = vector.load %arg7[%c0, %c0_0] : memref<16x16xf32, #tpu.memory_space<vmem>>, vector<16x16xf32>
    %c0_1 = arith.constant 0 : index
    %c0_2 = arith.constant 0 : index
    %1 = vector.load %arg0[%c0_1, %c0_2] : memref<16x32xf32, #tpu.memory_space<vmem>>, vector<16x32xf32>
    %c0_3 = arith.constant 0 : index
    %c0_4 = arith.constant 0 : index
    %2 = vector.load %arg1[%c0_3, %c0_4] : memref<32x32xbf16, #tpu.memory_space<vmem>>, vector<32x32xbf16>
    %c0_5 = arith.constant 0 : index
    %c0_6 = arith.constant 0 : index
    %3 = vector.load %arg2[%c0_5, %c0_6] : memref<2x32xf32, #tpu.memory_space<vmem>>, vector<2x32xf32>
    %4 = arith.truncf %1 : vector<16x32xf32> to vector<16x32xbf16>
    %cst = arith.constant dense<0.000000e+00> : vector<16x32xf32>
    %5 = tpu.matmul %4, %2, %cst {dimension_numbers = #tpu.dot_dimension_numbers<[1], [0], [0], [1], [0, 0, 1, 1], [], []>} : vector<16x32xbf16>, vector<32x32xbf16>, vector<16x32xf32> -> vector<16x32xf32>
    %6 = vector.extract_strided_slice %3 {offsets = [0, 0], sizes = [1, 32], strides = [1, 1]} : vector<2x32xf32> to vector<1x32xf32>
    %7 = vector.broadcast %6 : vector<1x32xf32> to vector<16x32xf32>
    %8 = arith.mulf %5, %7 : vector<16x32xf32>
    %cst_7 = arith.constant dense<0.000000e+00> : vector<16xf32>
    %9 = vector.multi_reduction <add>, %8, %cst_7 [1] : vector<16x32xf32> to vector<16xf32>
    %10 = vector.shape_cast %9 : vector<16xf32> to vector<16x1xf32>
    %11 = vector.extract_strided_slice %3 {offsets = [1, 0], sizes = [1, 32], strides = [1, 1]} : vector<2x32xf32> to vector<1x32xf32>
    %12 = vector.broadcast %11 : vector<1x32xf32> to vector<16x32xf32>
    %13 = arith.mulf %5, %12 : vector<16x32xf32>
    %cst_8 = arith.constant dense<0.000000e+00> : vector<16xf32>
    %14 = vector.multi_reduction <add>, %13, %cst_8 [1] : vector<16x32xf32> to vector<16xf32>
    %15 = vector.shape_cast %14 : vector<16xf32> to vector<16x1xf32>
    %16 = tpu.transpose %15, [1, 0] : vector<16x1xf32> -> vector<1x16xf32>
    %17 = vector.broadcast %10 : vector<16x1xf32> to vector<16x16xf32>
    %18 = vector.broadcast %16 : vector<1x16xf32> to vector<16x16xf32>
    %19 = arith.addf %17, %18 : vector<16x16xf32>
    %cst_9 = arith.constant 0.000000e+00 : f32
    %20 = vector.broadcast %cst_9 : f32 to vector<16x16xf32>
    %21 = arith.cmpf oge, %19, %20 : vector<16x16xf32>
    %cst_10 = arith.constant 2.000000e-01 : f32
    %22 = vector.broadcast %cst_10 : f32 to vector<16x16xf32>
    %23 = arith.mulf %22, %19 : vector<16x16xf32>
    %24 = arith.select %21, %19, %23 : vector<16x16xi1>, vector<16x16xf32>
    %25 = arith.addf %24, %0 : vector<16x16xf32>
    %cst_11 = arith.constant dense<0xFF800000> : vector<16xf32>
    %26 = vector.multi_reduction <maximumf>, %25, %cst_11 [1] : vector<16x16xf32> to vector<16xf32>
    %27 = vector.shape_cast %26 : vector<16xf32> to vector<16x1xf32>
    %28 = vector.broadcast %27 : vector<16x1xf32> to vector<16x16xf32>
    %29 = arith.subf %25, %28 : vector<16x16xf32>
    %30 = math.exp %29 : vector<16x16xf32>
    %cst_12 = arith.constant dense<0.000000e+00> : vector<16xf32>
    %31 = vector.multi_reduction <add>, %30, %cst_12 [1] : vector<16x16xf32> to vector<16xf32>
    %32 = vector.shape_cast %31 : vector<16xf32> to vector<16x1xf32>
    %cst_13 = arith.constant -1.000000e+29 : f32
    %33 = vector.broadcast %cst_13 : f32 to vector<16x1xf32>
    %34 = arith.cmpf ogt, %27, %33 : vector<16x1xf32>
    %cst_14 = arith.constant 1.000000e+00 : f32
    %35 = vector.broadcast %cst_14 : f32 to vector<16x1xf32>
    %36 = arith.divf %35, %32 : vector<16x1xf32>
    %cst_15 = arith.constant 0.000000e+00 : f32
    %37 = vector.broadcast %cst_15 : f32 to vector<16x1xf32>
    %38 = arith.select %34, %36, %37 : vector<16x1xi1>, vector<16x1xf32>
    %39 = vector.broadcast %38 : vector<16x1xf32> to vector<16x16xf32>
    %40 = arith.mulf %30, %39 : vector<16x16xf32>
    %41 = arith.truncf %40 : vector<16x16xf32> to vector<16x16xbf16>
    %42 = arith.truncf %5 : vector<16x32xf32> to vector<16x32xbf16>
    %cst_16 = arith.constant dense<0.000000e+00> : vector<16x32xf32>
    %43 = tpu.matmul %41, %42, %cst_16 {dimension_numbers = #tpu.dot_dimension_numbers<[1], [0], [0], [1], [0, 0, 1, 1], [], []>} : vector<16x16xbf16>, vector<16x32xbf16>, vector<16x32xf32> -> vector<16x32xf32>
    %cst_17 = arith.constant 0.000000e+00 : f32
    %44 = vector.broadcast %cst_17 : f32 to vector<16x32xf32>
    %45 = arith.cmpf ogt, %43, %44 : vector<16x32xf32>
    %cst_18 = arith.constant 0.000000e+00 : f32
    %46 = vector.broadcast %cst_18 : f32 to vector<16x32xf32>
    %47 = arith.minimumf %43, %46 : vector<16x32xf32>
    %48 = math.exp %47 : vector<16x32xf32>
    %cst_19 = arith.constant 1.000000e+00 : f32
    %49 = vector.broadcast %cst_19 : f32 to vector<16x32xf32>
    %50 = arith.subf %48, %49 : vector<16x32xf32>
    %51 = arith.select %45, %43, %50 : vector<16x32xi1>, vector<16x32xf32>
    %c0_20 = arith.constant 0 : index
    %c0_21 = arith.constant 0 : index
    %52 = vector.load %arg3[%c0_20, %c0_21] : memref<32x16xbf16, #tpu.memory_space<vmem>>, vector<32x16xbf16>
    %c0_22 = arith.constant 0 : index
    %c0_23 = arith.constant 0 : index
    %53 = vector.load %arg4[%c0_22, %c0_23] : memref<2x16xf32, #tpu.memory_space<vmem>>, vector<2x16xf32>
    %54 = arith.truncf %51 : vector<16x32xf32> to vector<16x32xbf16>
    %cst_24 = arith.constant dense<0.000000e+00> : vector<16x16xf32>
    %55 = tpu.matmul %54, %52, %cst_24 {dimension_numbers = #tpu.dot_dimension_numbers<[1], [0], [0], [1], [0, 0, 1, 1], [], []>} : vector<16x32xbf16>, vector<32x16xbf16>, vector<16x16xf32> -> vector<16x16xf32>
    %56 = vector.extract_strided_slice %53 {offsets = [0, 0], sizes = [1, 16], strides = [1, 1]} : vector<2x16xf32> to vector<1x16xf32>
    %57 = vector.broadcast %56 : vector<1x16xf32> to vector<16x16xf32>
    %58 = arith.mulf %55, %57 : vector<16x16xf32>
    %cst_25 = arith.constant dense<0.000000e+00> : vector<16xf32>
    %59 = vector.multi_reduction <add>, %58, %cst_25 [1] : vector<16x16xf32> to vector<16xf32>
    %60 = vector.shape_cast %59 : vector<16xf32> to vector<16x1xf32>
    %61 = vector.extract_strided_slice %53 {offsets = [1, 0], sizes = [1, 16], strides = [1, 1]} : vector<2x16xf32> to vector<1x16xf32>
    %62 = vector.broadcast %61 : vector<1x16xf32> to vector<16x16xf32>
    %63 = arith.mulf %55, %62 : vector<16x16xf32>
    %cst_26 = arith.constant dense<0.000000e+00> : vector<16xf32>
    %64 = vector.multi_reduction <add>, %63, %cst_26 [1] : vector<16x16xf32> to vector<16xf32>
    %65 = vector.shape_cast %64 : vector<16xf32> to vector<16x1xf32>
    %66 = tpu.transpose %65, [1, 0] : vector<16x1xf32> -> vector<1x16xf32>
    %67 = vector.broadcast %60 : vector<16x1xf32> to vector<16x16xf32>
    %68 = vector.broadcast %66 : vector<1x16xf32> to vector<16x16xf32>
    %69 = arith.addf %67, %68 : vector<16x16xf32>
    %cst_27 = arith.constant 0.000000e+00 : f32
    %70 = vector.broadcast %cst_27 : f32 to vector<16x16xf32>
    %71 = arith.cmpf oge, %69, %70 : vector<16x16xf32>
    %cst_28 = arith.constant 2.000000e-01 : f32
    %72 = vector.broadcast %cst_28 : f32 to vector<16x16xf32>
    %73 = arith.mulf %72, %69 : vector<16x16xf32>
    %74 = arith.select %71, %69, %73 : vector<16x16xi1>, vector<16x16xf32>
    %75 = arith.addf %74, %0 : vector<16x16xf32>
    %cst_29 = arith.constant dense<0xFF800000> : vector<16xf32>
    %76 = vector.multi_reduction <maximumf>, %75, %cst_29 [1] : vector<16x16xf32> to vector<16xf32>
    %77 = vector.shape_cast %76 : vector<16xf32> to vector<16x1xf32>
    %78 = vector.broadcast %77 : vector<16x1xf32> to vector<16x16xf32>
    %79 = arith.subf %75, %78 : vector<16x16xf32>
    %80 = math.exp %79 : vector<16x16xf32>
    %cst_30 = arith.constant dense<0.000000e+00> : vector<16xf32>
    %81 = vector.multi_reduction <add>, %80, %cst_30 [1] : vector<16x16xf32> to vector<16xf32>
    %82 = vector.shape_cast %81 : vector<16xf32> to vector<16x1xf32>
    %cst_31 = arith.constant -1.000000e+29 : f32
    %83 = vector.broadcast %cst_31 : f32 to vector<16x1xf32>
    %84 = arith.cmpf ogt, %77, %83 : vector<16x1xf32>
    %cst_32 = arith.constant 1.000000e+00 : f32
    %85 = vector.broadcast %cst_32 : f32 to vector<16x1xf32>
    %86 = arith.divf %85, %82 : vector<16x1xf32>
    %cst_33 = arith.constant 0.000000e+00 : f32
    %87 = vector.broadcast %cst_33 : f32 to vector<16x1xf32>
    %88 = arith.select %84, %86, %87 : vector<16x1xi1>, vector<16x1xf32>
    %89 = vector.broadcast %88 : vector<16x1xf32> to vector<16x16xf32>
    %90 = arith.mulf %80, %89 : vector<16x16xf32>
    %91 = arith.truncf %90 : vector<16x16xf32> to vector<16x16xbf16>
    %92 = arith.truncf %55 : vector<16x16xf32> to vector<16x16xbf16>
    %cst_34 = arith.constant dense<0.000000e+00> : vector<16x16xf32>
    %93 = tpu.matmul %91, %92, %cst_34 {dimension_numbers = #tpu.dot_dimension_numbers<[1], [0], [0], [1], [0, 0, 1, 1], [], []>} : vector<16x16xbf16>, vector<16x16xbf16>, vector<16x16xf32> -> vector<16x16xf32>
    %cst_35 = arith.constant 0.000000e+00 : f32
    %94 = vector.broadcast %cst_35 : f32 to vector<16x16xf32>
    %95 = arith.cmpf ogt, %93, %94 : vector<16x16xf32>
    %cst_36 = arith.constant 0.000000e+00 : f32
    %96 = vector.broadcast %cst_36 : f32 to vector<16x16xf32>
    %97 = arith.minimumf %93, %96 : vector<16x16xf32>
    %98 = math.exp %97 : vector<16x16xf32>
    %cst_37 = arith.constant 1.000000e+00 : f32
    %99 = vector.broadcast %cst_37 : f32 to vector<16x16xf32>
    %100 = arith.subf %98, %99 : vector<16x16xf32>
    %101 = arith.select %95, %93, %100 : vector<16x16xi1>, vector<16x16xf32>
    %c0_38 = arith.constant 0 : index
    %c0_39 = arith.constant 0 : index
    %102 = vector.load %arg5[%c0_38, %c0_39] : memref<16x8xf32, #tpu.memory_space<vmem>>, vector<16x8xf32>
    %cst_40 = arith.constant dense<0.000000e+00> : vector<16x8xf32>
    %103 = tpu.matmul %101, %102, %cst_40 {dimension_numbers = #tpu.dot_dimension_numbers<[1], [0], [0], [1], [0, 0, 1, 1], [], []>} : vector<16x16xf32>, vector<16x8xf32>, vector<16x8xf32> -> vector<16x8xf32>
    %c0_41 = arith.constant 0 : index
    %c0_42 = arith.constant 0 : index
    %104 = vector.load %arg6[%c0_41, %c0_42] : memref<1x8xf32, #tpu.memory_space<vmem>>, vector<1x8xf32>
    %105 = vector.broadcast %104 : vector<1x8xf32> to vector<16x8xf32>
    %106 = arith.addf %103, %105 : vector<16x8xf32>
    %cst_43 = arith.constant dense<0xFF800000> : vector<16xf32>
    %107 = vector.multi_reduction <maximumf>, %106, %cst_43 [1] : vector<16x8xf32> to vector<16xf32>
    %108 = vector.shape_cast %107 : vector<16xf32> to vector<16x1xf32>
    %109 = vector.broadcast %108 : vector<16x1xf32> to vector<16x8xf32>
    %110 = arith.subf %106, %109 : vector<16x8xf32>
    %111 = math.exp %110 : vector<16x8xf32>
    %cst_44 = arith.constant dense<0.000000e+00> : vector<16xf32>
    %112 = vector.multi_reduction <add>, %111, %cst_44 [1] : vector<16x8xf32> to vector<16xf32>
    %113 = vector.shape_cast %112 : vector<16xf32> to vector<16x1xf32>
    %114 = math.log %113 : vector<16x1xf32>
    %115 = arith.addf %114, %108 : vector<16x1xf32>
    %116 = vector.broadcast %115 : vector<16x1xf32> to vector<16x8xf32>
    %117 = arith.subf %106, %116 : vector<16x8xf32>
    %c0_45 = arith.constant 0 : index
    %c0_46 = arith.constant 0 : index
    %118 = vector.load %arg8[%c0_45, %c0_46] : memref<16x8xf32, #tpu.memory_space<vmem>>, vector<16x8xf32>
    tpu.vector_store %arg8[%c0_45, %c0_46], %117 {strides = array<i32>} : memref<16x8xf32, #tpu.memory_space<vmem>>, vector<16x8xf32>,
    return
  }
}

</mosaic_0001>

<llo_original>
// kernel: tpu_custom_call.1
$region0: #{tpu_custom_call.1}
  #allocation0 [shape = 'u32[]', space=smem, size = 0x4, offset = 0x4, fixed_abs, tag = 'smem constant byte address 0x4 - core index']
  #allocation1 [shape = 'u32[144,128]{1,0:T(1,128)}', space=vmem, size = 0x12000, scoped, tag = 'internal scratch']
  %s0 = inlined_call_operand.vmem [shape: f32[16,32], index: 0, kind: input, shape index: {}]
  %s1 = inlined_call_operand.vmem [shape: bf16[32,32], index: 1, kind: input, shape index: {}]
  %s2 = inlined_call_operand.vmem [shape: f32[2,32], index: 2, kind: input, shape index: {}]
  %s3 = inlined_call_operand.vmem [shape: bf16[32,16], index: 3, kind: input, shape index: {}]
  %s4 = inlined_call_operand.hbm [shape: f32[2,16], index: 4, kind: input, shape index: {}]
  %s5 = inlined_call_operand.vmem [shape: f32[16,8], index: 5, kind: input, shape index: {}]
  %s6 = inlined_call_operand.vmem [shape: f32[1,8], index: 6, kind: input, shape index: {}]
  %s7 = inlined_call_operand.vmem [shape: f32[16,16], index: 7, kind: input, shape index: {}]
  %s8 = inlined_call_operand.vmem [shape: f32[16,8], index: 8, kind: output, shape index: {}]
  %s9 = sld [smem:[#allocation0]]
  $region46: #{tpu_custom_call.1} parent=0
    _
  %s11 = ssub.s32 1, %s9
  %s12 = scalar_select 0, %s11, %s9
  $region1: #{tpu_custom_call.1} parent=0
    #allocation2 [shape = 'u8[1024]{0}', space=vmem, size = 0x400, scoped, tag = 'input window, operand 4, single buffered']
    #allocation3 [shape = 's32[1]{0}', space=sflag, size = 0x4, scoped, tag = 'scoped memory for tpu_custom_call.1']
    %13 = vsyncpa [#allocation3], 0
    // Predicated region
    $region2: #{tpu_custom_call.1} parent=1 // pred_check
      _
    $region3: #{tpu_custom_call.1} parent=1 // pred_check_branch
      %15 = sbr.rel (0) target = $region5
    $region4: #{tpu_custom_call.1} parent=1 // pred_region
      _
    $region5: #{tpu_custom_call.1} parent=1 // pred_fallthru
      _
    // Predicated region
    $region6: #{tpu_custom_call.1} parent=1 // pred_check
      _
    $region7: #{tpu_custom_call.1} parent=1 // pred_check_branch
      %17 = sbr.rel (0) target = $region9
    $region8: #{tpu_custom_call.1} parent=1 // pred_region
      _
    $region9: #{tpu_custom_call.1} parent=1 // pred_fallthru
      _
    // Predicated region
    $region10: #{tpu_custom_call.1} parent=1 // pred_check
      _
    $region11: #{tpu_custom_call.1} parent=1 // pred_check_branch
      %19 = sbr.rel (0) target = $region13
    $region12: #{tpu_custom_call.1} parent=1 // pred_region
      _
    $region13: #{tpu_custom_call.1} parent=1 // pred_fallthru
      _
    // Predicated region
    $region14: #{tpu_custom_call.1} parent=1 // pred_check
      _
    $region15: #{tpu_custom_call.1} parent=1 // pred_check_branch
      %21 = sbr.rel (0) target = $region17
    $region16: #{tpu_custom_call.1} parent=1 // pred_region
      _
    $region17: #{tpu_custom_call.1} parent=1 // pred_fallthru
      _
    // Predicated region
    $region18: #{tpu_custom_call.1} parent=1 // pred_check
      _
    $region19: #{tpu_custom_call.1} parent=1 // pred_check_branch
      %23 = sbr.rel (0) target = $region21
    $region20: #{tpu_custom_call.1} parent=1 // pred_region
      %s25 = ssub.s32 32, 32
      %26 = vsyncadd [#allocation3], %s25
      %s28 = sshll.u32 [#allocation2], 4
      %s29 = int_to_ptr.vmem [resolvable:$true] %s28
      %31 = dma.hbm_to_vmem [thread:$0]  %s4, 32, %s29, [#allocation3]
    $region21: #{tpu_custom_call.1} parent=1 // pred_fallthru
      _
    // Predicated region
    $region22: #{tpu_custom_call.1} parent=1 // pred_check
      _
    $region23: #{tpu_custom_call.1} parent=1 // pred_check_branch
      %33 = sbr.rel (0) target = $region25
    $region24: #{tpu_custom_call.1} parent=1 // pred_region
      _
    $region25: #{tpu_custom_call.1} parent=1 // pred_fallthru
      _
    // Predicated region
    $region26: #{tpu_custom_call.1} parent=1 // pred_check
      _
    $region27: #{tpu_custom_call.1} parent=1 // pred_check_branch
      %35 = sbr.rel (0) target = $region29
    $region28: #{tpu_custom_call.1} parent=1 // pred_region
      _
    $region29: #{tpu_custom_call.1} parent=1 // pred_fallthru
      _
    // Predicated region
    $region30: #{tpu_custom_call.1} parent=1 // pred_check
      _
    $region31: #{tpu_custom_call.1} parent=1 // pred_check_branch
      %37 = sbr.rel (0) target = $region33
    $region32: #{tpu_custom_call.1} parent=1 // pred_region
      _
    $region33: #{tpu_custom_call.1} parent=1 // pred_fallthru
      _
    // Predicated region
    $region34: #{tpu_custom_call.1} parent=1 // pred_check
      _
    $region35: #{tpu_custom_call.1} parent=1 // pred_check_branch
      %39 = sbr.rel (0) target = $region37
    $region36: #{tpu_custom_call.1} parent=1 // pred_region
      %40 = dma.done [#allocation3], 32
    $region37: #{tpu_custom_call.1} parent=1 // pred_fallthru
      _
    %v42 = vld [vmem:[%s7] sm:$0xff]
    %v43 = vld [vmem:[%s7 + $0x8] sm:$0xff]
    %v44 = vld [vmem:[%s0] sm:$0xff]
    %v45 = vld [vmem:[%s0 + $0x8] sm:$0xff]
    %v46 = vld [vmem:[%s1] sm:$0xf]
    %v47 = vld [vmem:[%s1 + $0x4] sm:$0xf]
    %v48 = vld [vmem:[%s1 + $0x8] sm:$0xf]
    %v49 = vld [vmem:[%s1 + $0xc] sm:$0xf]
    %v50 = vld [vmem:[%s2] sm:$0x3]
    %v51 = vpack.c.bf16 %v45, %v44
    %v56 = vunpack.c.l.b16 %v46
    %v57 = vunpack.c.l.b16 %v47
    %v58 = vunpack.c.l.b16 %v48
    %v59 = vunpack.c.l.b16 %v49
    %v60 = vpack.c.b16 %v57, %v56
    %v61 = vpack.c.b16 %v59, %v58
    %vm64 = vcmask 261120
    %v66 = vsel %vm64, %v51, 0
    %68 = vmatprep.subr.bf16.mxu0 0
    %69 = vmatpush1.bf16.msra.mxu0 %v60
    %70 = vmatprep.subr.bf16.mxu0 0
    %71 = vmatpush1.bf16.msra.mxu0 %v61
    %72 = vmatprep.subr.bf16.mxu0 0
    %73 = vmatpush1.bf16.msra.mxu0 0
    %74 = vmatprep.subr.bf16.mxu0 0
    %75 = vmatpush1.bf16.msra.mxu0 0
    %76 = vmatprep.subr.bf16.mxu0 0
    %77 = vmatpush1.bf16.msra.mxu0 0
    %78 = vmatprep.subr.bf16.mxu0 0
    %79 = vmatpush1.bf16.msra.mxu0 0
    %80 = vmatprep.subr.bf16.mxu0 0
    %81 = vmatpush1.bf16.msra.mxu0 0
    %82 = vmatprep.subr.bf16.mxu0 0
    %83 = vmatpush1.bf16.msra.mxu0 0
    %84 = vmatprep.subr.bf16.mxu0 0
    %85 = vmatpush1.bf16.msra.mxu0 0
    %86 = vmatprep.subr.bf16.mxu0 0
    %87 = vmatpush1.bf16.msra.mxu0 0
    %88 = vmatprep.subr.bf16.mxu0 0
    %89 = vmatpush1.bf16.msra.mxu0 0
    %90 = vmatprep.subr.bf16.mxu0 0
    %91 = vmatpush1.bf16.msra.mxu0 0
    %92 = vmatprep.subr.bf16.mxu0 0
    %93 = vmatpush1.bf16.msra.mxu0 0
    %94 = vmatprep.subr.bf16.mxu0 0
    %95 = vmatpush1.bf16.msra.mxu0 0
    %96 = vmatprep.subr.bf16.mxu0 0
    %97 = vmatpush1.bf16.msra.mxu0 0
    %98 = vmatprep.subr.bf16.mxu0 0
    %99 = vmatpush1.bf16.msra.mxu0 0
    %100 = vmatprep.mubr.bf16.mxu0 0
    %101 = vmatmul.mubr.bf16.gmra.mrb[0].mxu0 %v66
    %v102 = vpop.f32.mrb[0].mxu0
    %v103 = vadd.f32 0.0, %v102
    %v104 = vpop.f32.mrb[0].mxu0
    %v105 = vpop.f32.mrb[0].mxu0
    %v106 = vadd.f32 0.0, %v105
    %v107 = vpop.f32.mrb[0].mxu0
    %108 = vdwg.mxu0
    %v109 = vlaneseq
    %v110 = vshrl.u32 %v109, 7
    %v111 = vsub.s32 0, %v110
    %v112 = vrot.slane %v50, %v111
    %v113 = vmul.f32 %v103, %v112
    %v114 = vmul.f32 %v106, %v112
    %v115 = vsel %vm64, %v113, 0.0
    %116 = vadd.xlane.f32.xlu0 %v115
    %v117 = vpop.xlane.xlu0 %116
    %v118 = vsel %vm64, %v114, 0.0
    %119 = vadd.xlane.f32.xlu0 %v118
    %v120 = vpop.xlane.xlu0 %119
    %v121 = vlaneseq
    %v122 = vshrl.u32 %v121, 7
    %v123 = vsub.s32 1, %v122
    %v124 = vrot.slane %v50, %v123
    %v125 = vmul.f32 %v103, %v124
    %v126 = vmul.f32 %v106, %v124
    %v127 = vsel %vm64, %v125, 0.0
    %128 = vadd.xlane.f32.xlu0 %v127
    %v129 = vpop.xlane.xlu0 %128
    %v130 = vsel %vm64, %v126, 0.0
    %131 = vadd.xlane.f32.xlu0 %v130
    %v132 = vpop.xlane.xlu0 %131
    %133 = vxpose.xlu0.b32.start [1/16] %v129, 128
    %134 = vxpose.xlu0.b32.cont [2/16] %v132, 128
    %135 = vxpose.xlu0.b32.cont [3/16] 0.0, 128
    %136 = vxpose.xlu0.b32.cont [4/16] 0.0, 128
    %137 = vxpose.xlu0.b32.cont [5/16] 0.0, 128
    %138 = vxpose.xlu0.b32.cont [6/16] 0.0, 128
    %139 = vxpose.xlu0.b32.cont [7/16] 0.0, 128
    %140 = vxpose.xlu0.b32.cont [8/16] 0.0, 128
    %141 = vxpose.xlu0.b32.cont [9/16] 0.0, 128
    %142 = vxpose.xlu0.b32.cont [10/16] 0.0, 128
    %143 = vxpose.xlu0.b32.cont [11/16] 0.0, 128
    %144 = vxpose.xlu0.b32.cont [12/16] 0.0, 128
    %145 = vxpose.xlu0.b32.cont [13/16] 0.0, 128
    %146 = vxpose.xlu0.b32.cont [14/16] 0.0, 128
    %147 = vxpose.xlu0.b32.cont [15/16] 0.0, 128
    %148 = vxpose.xlu0.b32.end [16/16] 0.0, 128
    %v149 = vpop.trf.xlu0
    %v150 = vpop.trf.xlu0
    %v151 = vpop.trf.xlu0
    %v152 = vpop.trf.xlu0
    %v153 = vpop.trf.xlu0
    %v154 = vpop.trf.xlu0
    %v155 = vpop.trf.xlu0
    %v156 = vpop.trf.xlu0
    %v157 = vpop.trf.xlu0
    %v158 = vpop.trf.xlu0
    %v159 = vpop.trf.xlu0
    %v160 = vpop.trf.xlu0
    %v161 = vpop.trf.xlu0
    %v162 = vpop.trf.xlu0
    %v163 = vpop.trf.xlu0
    %v164 = vpop.trf.xlu0
    %v165 = vlaneseq
    %v166 = vshrl.u32 %v165, 7
    %v167 = vsub.s32 0, %v166
    %v168 = vrot.slane %v149, %v167
    %v169 = vadd.f32 %v117, %v168
    %v170 = vadd.f32 %v120, %v168
    %vm171 = vcmp.ge.f32.partialorder %v169, 0.0
    %vm172 = vcmp.ge.f32.partialorder %v170, 0.0
    %v173 = vmul.f32 %v169, 0.2
    %v174 = vmul.f32 %v170, 0.2
    %v175 = vsel %vm171, %v169, %v173
    %v176 = vsel %vm172, %v170, %v174
    %v177 = vadd.f32 %v175, %v42
    %v178 = vadd.f32 %v176, %v43
    %vm179 = vcmask 130048
    %v180 = vsel %vm179, %v177, -inf
    %181 = vmax.xlane.f32.xlu0 %v180
    %v182 = vpop.xlane.xlu0 %181
    %v183 = vsel %vm179, %v178, -inf
    %184 = vmax.xlane.f32.xlu0 %v183
    %v185 = vpop.xlane.xlu0 %184
    %v186 = vsub.f32 %v177, %v182
    %v187 = vsub.f32 %v178, %v185
    %v188 = vmul.f32 %v186, 1.442695
    %v189 = vpow.pop %v188
    %v190 = vmul.f32 %v187, 1.442695
    %v191 = vpow.pop %v190
    %v192 = vsel %vm179, %v189, 0.0
    %193 = vadd.xlane.f32.xlu0 %v192
    %v194 = vpop.xlane.xlu0 %193
    %v195 = vsel %vm179, %v191, 0.0
    %196 = vadd.xlane.f32.xlu0 %v195
    %v197 = vpop.xlane.xlu0 %196
    %vm198 = vcmp.gt.f32.partialorder %v182, -1e+29
    %vm199 = vcmp.gt.f32.partialorder %v185, -1e+29
    %v200 = vrcp.pop %v194
    %v201 = vmul.f32 1.0, %v200
    %v202 = vrcp.pop %v197
    %v203 = vmul.f32 1.0, %v202
    %v204 = vsel %vm198, %v201, 0.0
    %v205 = vsel %vm199, %v203, 0.0
    %v206 = vmul.f32 %v189, %v204
    %v207 = vmul.f32 %v191, %v205
    %v208 = vpack.c.bf16 %v207, %v206
    %v209 = vpack.c.bf16 %v106, %v103
    %v211 = vsel %vm179, %v208, 0
    %213 = vmatprep.subr.bf16.mxu0 0
    %214 = vmatpush1.bf16.msra.mxu0 %v209
    %215 = vmatprep.subr.bf16.mxu0 0
    %216 = vmatpush1.bf16.msra.mxu0 0
    %217 = vmatprep.subr.bf16.mxu0 0
    %218 = vmatpush1.bf16.msra.mxu0 0
    %219 = vmatprep.subr.bf16.mxu0 0
    %220 = vmatpush1.bf16.msra.mxu0 0
    %221 = vmatprep.subr.bf16.mxu0 0
    %222 = vmatpush1.bf16.msra.mxu0 0
    %223 = vmatprep.subr.bf16.mxu0 0
    %224 = vmatpush1.bf16.msra.mxu0 0
    %225 = vmatprep.subr.bf16.mxu0 0
    %226 = vmatpush1.bf16.msra.mxu0 0
    %227 = vmatprep.subr.bf16.mxu0 0
    %228 = vmatpush1.bf16.msra.mxu0 0
    %229 = vmatprep.subr.bf16.mxu0 0
    %230 = vmatpush1.bf16.msra.mxu0 0
    %231 = vmatprep.subr.bf16.mxu0 0
    %232 = vmatpush1.bf16.msra.mxu0 0
    %233 = vmatprep.subr.bf16.mxu0 0
    %234 = vmatpush1.bf16.msra.mxu0 0
    %235 = vmatprep.subr.bf16.mxu0 0
    %236 = vmatpush1.bf16.msra.mxu0 0
    %237 = vmatprep.subr.bf16.mxu0 0
    %238 = vmatpush1.bf16.msra.mxu0 0
    %239 = vmatprep.subr.bf16.mxu0 0
    %240 = vmatpush1.bf16.msra.mxu0 0
    %241 = vmatprep.subr.bf16.mxu0 0
    %242 = vmatpush1.bf16.msra.mxu0 0
    %243 = vmatprep.subr.bf16.mxu0 0
    %244 = vmatpush1.bf16.msra.mxu0 0
    %245 = vmatprep.mubr.bf16.mxu0 0
    %246 = vmatmul.mubr.bf16.gmra.mrb[0].mxu0 %v211
    %v247 = vpop.f32.mrb[0].mxu0
    %v248 = vadd.f32 0.0, %v247
    %v249 = vpop.f32.mrb[0].mxu0
    %v250 = vpop.f32.mrb[0].mxu0
    %v251 = vadd.f32 0.0, %v250
    %v252 = vpop.f32.mrb[0].mxu0
    %253 = vdwg.mxu0
    %vm254 = vcmp.gt.f32.partialorder %v248, 0.0
    %vm255 = vcmp.gt.f32.partialorder %v251, 0.0
    %v256 = vmin.f32 %v248, 0.0
    %v257 = vmin.f32 %v251, 0.0
    %v258 = vmul.f32 %v256, 1.442695
    %v259 = vpow.pop %v258
    %v260 = vmul.f32 %v257, 1.442695
    %v261 = vpow.pop %v260
    %v262 = vsub.f32 %v259, 1.0
    %v263 = vsub.f32 %v261, 1.0
    %v264 = vsel %vm254, %v248, %v262
    %v265 = vsel %vm255, %v251, %v263
    %v266 = vld [vmem:[%s3] sm:$0xf]
    %v267 = vld [vmem:[%s3 + $0x4] sm:$0xf]
    %v268 = vld [vmem:[%s3 + $0x8] sm:$0xf]
    %v269 = vld [vmem:[%s3 + $0xc] sm:$0xf]
    %v270 = vld [vmem:[#allocation2] sm:$0x3]
    %v271 = vpack.c.bf16 %v265, %v264
    %v276 = vunpack.c.l.b16 %v266
    %v277 = vunpack.c.l.b16 %v267
    %v278 = vunpack.c.l.b16 %v268
    %v279 = vunpack.c.l.b16 %v269
    %v280 = vpack.c.b16 %v277, %v276
    %v281 = vpack.c.b16 %v279, %v278
    %v285 = vsel %vm64, %v271, 0
    %287 = vmatprep.subr.bf16.mxu0 0
    %288 = vmatpush1.bf16.msra.mxu0 %v280
    %289 = vmatprep.subr.bf16.mxu0 0
    %290 = vmatpush1.bf16.msra.mxu0 %v281
    %291 = vmatprep.subr.bf16.mxu0 0
    %292 = vmatpush1.bf16.msra.mxu0 0
    %293 = vmatprep.subr.bf16.mxu0 0
    %294 = vmatpush1.bf16.msra.mxu0 0
    %295 = vmatprep.subr.bf16.mxu0 0
    %296 = vmatpush1.bf16.msra.mxu0 0
    %297 = vmatprep.subr.bf16.mxu0 0
    %298 = vmatpush1.bf16.msra.mxu0 0
    %299 = vmatprep.subr.bf16.mxu0 0
    %300 = vmatpush1.bf16.msra.mxu0 0
    %301 = vmatprep.subr.bf16.mxu0 0
    %302 = vmatpush1.bf16.msra.mxu0 0
    %303 = vmatprep.subr.bf16.mxu0 0
    %304 = vmatpush1.bf16.msra.mxu0 0
    %305 = vmatprep.subr.bf16.mxu0 0
    %306 = vmatpush1.bf16.msra.mxu0 0
    %307 = vmatprep.subr.bf16.mxu0 0
    %308 = vmatpush1.bf16.msra.mxu0 0
    %309 = vmatprep.subr.bf16.mxu0 0
    %310 = vmatpush1.bf16.msra.mxu0 0
    %311 = vmatprep.subr.bf16.mxu0 0
    %312 = vmatpush1.bf16.msra.mxu0 0
    %313 = vmatprep.subr.bf16.mxu0 0
    %314 = vmatpush1.bf16.msra.mxu0 0
    %315 = vmatprep.subr.bf16.mxu0 0
    %316 = vmatpush1.bf16.msra.mxu0 0
    %317 = vmatprep.subr.bf16.mxu0 0
    %318 = vmatpush1.bf16.msra.mxu0 0
    %319 = vmatprep.mubr.bf16.mxu0 0
    %320 = vmatmul.mubr.bf16.gmra.mrb[0].mxu0 %v285
    %v321 = vpop.f32.mrb[0].mxu0
    %v322 = vadd.f32 0.0, %v321
    %v323 = vpop.f32.mrb[0].mxu0
    %v324 = vpop.f32.mrb[0].mxu0
    %v325 = vadd.f32 0.0, %v324
    %v326 = vpop.f32.mrb[0].mxu0
    %327 = vdwg.mxu0
    %v328 = vlaneseq
    %v329 = vshrl.u32 %v328, 7
    %v330 = vsub.s32 0, %v329
    %v331 = vrot.slane %v270, %v330
    %v332 = vmul.f32 %v322, %v331
    %v333 = vmul.f32 %v325, %v331
    %v334 = vsel %vm179, %v332, 0.0
    %335 = vadd.xlane.f32.xlu0 %v334
    %v336 = vpop.xlane.xlu0 %335
    %v337 = vsel %vm179, %v333, 0.0
    %338 = vadd.xlane.f32.xlu0 %v337
    %v339 = vpop.xlane.xlu0 %338
    %v340 = vlaneseq
    %v341 = vshrl.u32 %v340, 7
    %v342 = vsub.s32 1, %v341
    %v343 = vrot.slane %v270, %v342
    %v344 = vmul.f32 %v322, %v343
    %v345 = vmul.f32 %v325, %v343
    %v346 = vsel %vm179, %v344, 0.0
    %347 = vadd.xlane.f32.xlu0 %v346
    %v348 = vpop.xlane.xlu0 %347
    %v349 = vsel %vm179, %v345, 0.0
    %350 = vadd.xlane.f32.xlu0 %v349
    %v351 = vpop.xlane.xlu0 %350
    %352 = vxpose.xlu0.b32.start [1/16] %v348, 128
    %353 = vxpose.xlu0.b32.cont [2/16] %v351, 128
    %354 = vxpose.xlu0.b32.cont [3/16] 0.0, 128
    %355 = vxpose.xlu0.b32.cont [4/16] 0.0, 128
    %356 = vxpose.xlu0.b32.cont [5/16] 0.0, 128
    %357 = vxpose.xlu0.b32.cont [6/16] 0.0, 128
    %358 = vxpose.xlu0.b32.cont [7/16] 0.0, 128
    %359 = vxpose.xlu0.b32.cont [8/16] 0.0, 128
    %360 = vxpose.xlu0.b32.cont [9/16] 0.0, 128
    %361 = vxpose.xlu0.b32.cont [10/16] 0.0, 128
    %362 = vxpose.xlu0.b32.cont [11/16] 0.0, 128
    %363 = vxpose.xlu0.b32.cont [12/16] 0.0, 128
    %364 = vxpose.xlu0.b32.cont [13/16] 0.0, 128
    %365 = vxpose.xlu0.b32.cont [14/16] 0.0, 128
    %366 = vxpose.xlu0.b32.cont [15/16] 0.0, 128
    %367 = vxpose.xlu0.b32.end [16/16] 0.0, 128
    %v368 = vpop.trf.xlu0
    %v369 = vpop.trf.xlu0
    %v370 = vpop.trf.xlu0
    %v371 = vpop.trf.xlu0
    %v372 = vpop.trf.xlu0
    %v373 = vpop.trf.xlu0
    %v374 = vpop.trf.xlu0
    %v375 = vpop.trf.xlu0
    %v376 = vpop.trf.xlu0
    %v377 = vpop.trf.xlu0
    %v378 = vpop.trf.xlu0
    %v379 = vpop.trf.xlu0
    %v380 = vpop.trf.xlu0
    %v381 = vpop.trf.xlu0
    %v382 = vpop.trf.xlu0
    %v383 = vpop.trf.xlu0
    %v384 = vlaneseq
    %v385 = vshrl.u32 %v384, 7
    %v386 = vsub.s32 0, %v385
    %v387 = vrot.slane %v368, %v386
    %v388 = vadd.f32 %v336, %v387
    %v389 = vadd.f32 %v339, %v387
    %vm390 = vcmp.ge.f32.partialorder %v388, 0.0
    %vm391 = vcmp.ge.f32.partialorder %v389, 0.0
    %v392 = vmul.f32 %v388, 0.2
    %v393 = vmul.f32 %v389, 0.2
    %v394 = vsel %vm390, %v388, %v392
    %v395 = vsel %vm391, %v389, %v393
    %v396 = vadd.f32 %v394, %v42
    %v397 = vadd.f32 %v395, %v43
    %v398 = vsel %vm179, %v396, -inf
    %399 = vmax.xlane.f32.xlu0 %v398
    %v400 = vpop.xlane.xlu0 %399
    %v401 = vsel %vm179, %v397, -inf
    %402 = vmax.xlane.f32.xlu0 %v401
    %v403 = vpop.xlane.xlu0 %402
    %v404 = vsub.f32 %v396, %v400
    %v405 = vsub.f32 %v397, %v403
    %v406 = vmul.f32 %v404, 1.442695
    %v407 = vpow.pop %v406
    %v408 = vmul.f32 %v405, 1.442695
    %v409 = vpow.pop %v408
    %v410 = vsel %vm179, %v407, 0.0
    %411 = vadd.xlane.f32.xlu0 %v410
    %v412 = vpop.xlane.xlu0 %411
    %v413 = vsel %vm179, %v409, 0.0
    %414 = vadd.xlane.f32.xlu0 %v413
    %v415 = vpop.xlane.xlu0 %414
    %vm416 = vcmp.gt.f32.partialorder %v400, -1e+29
    %vm417 = vcmp.gt.f32.partialorder %v403, -1e+29
    %v418 = vrcp.pop %v412
    %v419 = vmul.f32 1.0, %v418
    %v420 = vrcp.pop %v415
    %v421 = vmul.f32 1.0, %v420
    %v422 = vsel %vm416, %v419, 0.0
    %v423 = vsel %vm417, %v421, 0.0
    %v424 = vmul.f32 %v407, %v422
    %v425 = vmul.f32 %v409, %v423
    %v426 = vpack.c.bf16 %v425, %v424
    %v427 = vpack.c.bf16 %v325, %v322
    %v429 = vsel %vm179, %v426, 0
    %431 = vmatprep.subr.bf16.mxu0 0
    %432 = vmatpush1.bf16.msra.mxu0 %v427
    %433 = vmatprep.subr.bf16.mxu0 0
    %434 = vmatpush1.bf16.msra.mxu0 0
    %435 = vmatprep.subr.bf16.mxu0 0
    %436 = vmatpush1.bf16.msra.mxu0 0
    %437 = vmatprep.subr.bf16.mxu0 0
    %438 = vmatpush1.bf16.msra.mxu0 0
    %439 = vmatprep.subr.bf16.mxu0 0
    %440 = vmatpush1.bf16.msra.mxu0 0
    %441 = vmatprep.subr.bf16.mxu0 0
    %442 = vmatpush1.bf16.msra.mxu0 0
    %443 = vmatprep.subr.bf16.mxu0 0
    %444 = vmatpush1.bf16.msra.mxu0 0
    %445 = vmatprep.subr.bf16.mxu0 0
    %446 = vmatpush1.bf16.msra.mxu0 0
    %447 = vmatprep.subr.bf16.mxu0 0
    %448 = vmatpush1.bf16.msra.mxu0 0
    %449 = vmatprep.subr.bf16.mxu0 0
    %450 = vmatpush1.bf16.msra.mxu0 0
    %451 = vmatprep.subr.bf16.mxu0 0
    %452 = vmatpush1.bf16.msra.mxu0 0
    %453 = vmatprep.subr.bf16.mxu0 0
    %454 = vmatpush1.bf16.msra.mxu0 0
    %455 = vmatprep.subr.bf16.mxu0 0
    %456 = vmatpush1.bf16.msra.mxu0 0
    %457 = vmatprep.subr.bf16.mxu0 0
    %458 = vmatpush1.bf16.msra.mxu0 0
    %459 = vmatprep.subr.bf16.mxu0 0
    %460 = vmatpush1.bf16.msra.mxu0 0
    %461 = vmatprep.subr.bf16.mxu0 0
    %462 = vmatpush1.bf16.msra.mxu0 0
    %463 = vmatprep.mubr.bf16.mxu0 0
    %464 = vmatmul.mubr.bf16.gmra.mrb[0].mxu0 %v429
    %v465 = vpop.f32.mrb[0].mxu0
    %v466 = vadd.f32 0.0, %v465
    %v467 = vpop.f32.mrb[0].mxu0
    %v468 = vpop.f32.mrb[0].mxu0
    %v469 = vadd.f32 0.0, %v468
    %v470 = vpop.f32.mrb[0].mxu0
    %471 = vdwg.mxu0
    %vm472 = vcmp.gt.f32.partialorder %v466, 0.0
    %vm473 = vcmp.gt.f32.partialorder %v469, 0.0
    %v474 = vmin.f32 %v466, 0.0
    %v475 = vmin.f32 %v469, 0.0
    %v476 = vmul.f32 %v474, 1.442695
    %v477 = vpow.pop %v476
    %v478 = vmul.f32 %v475, 1.442695
    %v479 = vpow.pop %v478
    %v480 = vsub.f32 %v477, 1.0
    %v481 = vsub.f32 %v479, 1.0
    %v482 = vsel %vm472, %v466, %v480
    %v483 = vsel %vm473, %v469, %v481
    %v484 = vld [vmem:[%s5] sm:$0xff]
    %v485 = vld [vmem:[%s5 + $0x8] sm:$0xff]
    %v486 = vld [vmem:[%s6] sm:$0x1]
    %v488 = vlaneseq
    %v489 = vshrl.u32 %v488, 7
    %v490 = vsub.s32 0, %v489
    %v491 = vrot.slane %v486, %v490
    %v494 = vsel %vm179, %v482, 0
    %v497 = vsel %vm179, %v483, 0
    %499 = vmatprep.subr.mxu0 0.0
    %500 = vmatpush1.msra.mxu0 %v484
    %501 = vmatprep.subr.mxu0 0.0
    %502 = vmatpush1.msra.mxu0 %v485
    %503 = vmatprep.subr.mxu0 0.0
    %504 = vmatpush1.msra.mxu0 0.0
    %505 = vmatprep.subr.mxu0 0.0
    %506 = vmatpush1.msra.mxu0 0.0
    %507 = vmatprep.subr.mxu0 0.0
    %508 = vmatpush1.msra.mxu0 0.0
    %509 = vmatprep.subr.mxu0 0.0
    %510 = vmatpush1.msra.mxu0 0.0
    %511 = vmatprep.subr.mxu0 0.0
    %512 = vmatpush1.msra.mxu0 0.0
    %513 = vmatprep.subr.mxu0 0.0
    %514 = vmatpush1.msra.mxu0 0.0
    %515 = vmatprep.subr.mxu0 0.0
    %516 = vmatpush1.msra.mxu0 0.0
    %517 = vmatprep.subr.mxu0 0.0
    %518 = vmatpush1.msra.mxu0 0.0
    %519 = vmatprep.subr.mxu0 0.0
    %520 = vmatpush1.msra.mxu0 0.0
    %521 = vmatprep.subr.mxu0 0.0
    %522 = vmatpush1.msra.mxu0 0.0
    %523 = vmatprep.subr.mxu0 0.0
    %524 = vmatpush1.msra.mxu0 0.0
    %525 = vmatprep.subr.mxu0 0.0
    %526 = vmatpush1.msra.mxu0 0.0
    %527 = vmatprep.subr.mxu0 0.0
    %528 = vmatpush1.msra.mxu0 0.0
    %529 = vmatprep.subr.mxu0 0.0
    %530 = vmatpush1.msra.mxu0 0.0
    %531 = vmatprep.subr.mxu0 0.0
    %532 = vmatpush1.msra.mxu0 0.0
    %533 = vmatprep.subr.mxu0 0.0
    %534 = vmatpush1.msra.mxu0 0.0
    %535 = vmatprep.subr.mxu0 0.0
    %536 = vmatpush1.msra.mxu0 0.0
    %537 = vmatprep.subr.mxu0 0.0
    %538 = vmatpush1.msra.mxu0 0.0
    %539 = vmatprep.subr.mxu0 0.0
    %540 = vmatpush1.msra.mxu0 0.0
    %541 = vmatprep.subr.mxu0 0.0
    %542 = vmatpush1.msra.mxu0 0.0
    %543 = vmatprep.subr.mxu0 0.0
    %544 = vmatpush1.msra.mxu0 0.0
    %545 = vmatprep.subr.mxu0 0.0
    %546 = vmatpush1.msra.mxu0 0.0
    %547 = vmatprep.subr.mxu0 0.0
    %548 = vmatpush1.msra.mxu0 0.0
    %549 = vmatprep.subr.mxu0 0.0
    %550 = vmatpush1.msra.mxu0 0.0
    %551 = vmatprep.subr.mxu0 0.0
    %552 = vmatpush1.msra.mxu0 0.0
    %553 = vmatprep.subr.mxu0 0.0
    %554 = vmatpush1.msra.mxu0 0.0
    %555 = vmatprep.subr.mxu0 0.0
    %556 = vmatpush1.msra.mxu0 0.0
    %557 = vmatprep.subr.mxu0 0.0
    %558 = vmatpush1.msra.mxu0 0.0
    %559 = vmatprep.subr.mxu0 0.0
    %560 = vmatpush1.msra.mxu0 0.0
    %561 = vmatprep.subr.mxu0 0.0
    %562 = vmatpush1.msra.mxu0 0.0
    %563 = vmatprep.mubr.f32.mxu0 0.0
    %564 = vmatmul.mubr.f32.gmra.mrb[0].mxu0 %v494
    %v565 = vpop.f32.mrb[0].mxu0
    %v566 = vadd.f32 %v491, %v565
    %v567 = vpop.f32.mrb[0].mxu0
    %568 = vmatprep.mubr.f32.mxu0 0.0
    %569 = vmatmul.mubr.f32.gmra.mrb[0].mxu0 %v497
    %v570 = vpop.f32.mrb[0].mxu0
    %v571 = vadd.f32 %v491, %v570
    %v572 = vpop.f32.mrb[0].mxu0
    %573 = vdwg.mxu0
    %vm574 = vcmask 64512
    %v575 = vsel %vm574, %v566, -inf
    %576 = vmax.xlane.f32.xlu0 %v575
    %v577 = vpop.xlane.xlu0 %576
    %v578 = vsel %vm574, %v571, -inf
    %579 = vmax.xlane.f32.xlu0 %v578
    %v580 = vpop.xlane.xlu0 %579
    %v581 = vsub.f32 %v566, %v577
    %v582 = vsub.f32 %v571, %v580
    %v583 = vmul.f32 %v581, 1.442695
    %v584 = vpow.pop %v583
    %v585 = vmul.f32 %v582, 1.442695
    %v586 = vpow.pop %v585
    %v587 = vsel %vm574, %v584, 0.0
    %588 = vadd.xlane.f32.xlu0 %v587
    %v589 = vpop.xlane.xlu0 %588
    %v590 = vsel %vm574, %v586, 0.0
    %591 = vadd.xlane.f32.xlu0 %v590
    %v592 = vpop.xlane.xlu0 %591
    %v593 = vlog2.pop %v589
    %v594 = vmul.f32 %v593, 0.6931472
    %v595 = vlog2.pop %v592
    %v596 = vmul.f32 %v595, 0.6931472
    %v597 = vadd.f32 %v594, %v577
    %v598 = vadd.f32 %v596, %v580
    %v599 = vsub.f32 %v566, %v597
    %v600 = vsub.f32 %v571, %v598
    %601 = vst.msk [vmem:[%s8] sm:$0xff] %vm574, %v599
    %602 = vst.msk [vmem:[%s8 + $0x8] sm:$0xff] %vm574, %v600
    // Predicated region
    $region38: #{tpu_custom_call.1} parent=1 // pred_check
      _
    $region39: #{tpu_custom_call.1} parent=1 // pred_check_branch
      %604 = sbr.rel (0) target = $region41
    $region40: #{tpu_custom_call.1} parent=1 // pred_region
      _
    $region41: #{tpu_custom_call.1} parent=1 // pred_fallthru
      _
    // Predicated region
    $region42: #{tpu_custom_call.1} parent=1 // pred_check
      _
    $region43: #{tpu_custom_call.1} parent=1 // pred_check_branch
      %606 = sbr.rel (0) target = $region45
    $region44: #{tpu_custom_call.1} parent=1 // pred_region
      _
    $region45: #{tpu_custom_call.1} parent=1 // pred_fallthru
      _
    %607 = vsyncpa [#allocation3], 1

</llo_original>
